<compile_context>
chip_gen: v5e
topology: v5e:2x2
jax: 0.10.0
libtpu: 0.0.40
codegen_flags: <defaults>
</compile_context>

<pallas_src>
import numpy as np
import jax
import jax.numpy as jnp
from jax.experimental import pallas as pl
from jax.experimental.pallas import tpu as pltpu

L = 14          # input length (forced by Linear(32,...) after the 2 convs)
L1 = L + 1      # conv1 output length = 15
L2 = L + 2      # conv2 output length = 16
C1 = 5          # conv1 out channels
C2 = 2          # conv2 out channels
K = 4           # conv kernel size
PAD = 2         # conv padding


# ---------------------------------------------------------------------------
# Kernel: feature-major chain of matmuls. x block is (14, TB), weights are
# resident constants, output block is a lane-dense (1, TB) row.
# ---------------------------------------------------------------------------
def net_kernel(x_ref, t1_ref, b1_ref, t2_ref, b2_ref,
               wl1_ref, bl1_ref, wl2_ref, bl2_ref, wl3_ref, bl3_ref,
               wo_ref, bo_ref,
               out_ref):
    f32 = jnp.float32
    h = x_ref[...]                                            # (14, TB)

    # conv1 + ReLU  (Toeplitz matmul: (75,14) @ (14,TB))
    h = jnp.maximum(jnp.dot(t1_ref[...], h, preferred_element_type=f32)
                    + b1_ref[...], 0.0)                       # (75, TB)
    # conv2 + ReLU  ((32,75) @ (75,TB)); rows are already the channel-major
    # flatten that torch's .view(B, -1) produces.
    h = jnp.maximum(jnp.dot(t2_ref[...], h, preferred_element_type=f32)
                    + b2_ref[...], 0.0)                       # (32, TB)

    # MLP: 32 -> 64 -> 16 -> 8 with ReLU (PyTorch (out,in) weights used as-is)
    h = jnp.maximum(jnp.dot(wl1_ref[...], h, preferred_element_type=f32)
                    + bl1_ref[...], 0.0)                      # (64, TB)
    h = jnp.maximum(jnp.dot(wl2_ref[...], h, preferred_element_type=f32)
                    + bl2_ref[...], 0.0)                      # (16, TB)
    h = jnp.maximum(jnp.dot(wl3_ref[...], h, preferred_element_type=f32)
                    + bl3_ref[...], 0.0)                      # (8, TB)

    # out: 8 -> 1 as VPU multiply + cross-sublane reduce; lane-dense store.
    out_ref[...] = (jnp.sum(h * wo_ref[...], axis=0, keepdims=True)
                    + bo_ref[...]).astype(out_ref.dtype)      # (1, TB)


# ---------------------------------------------------------------------------
# Host-side (numpy) lowering of the convs to feature-major Toeplitz matrices.
# ---------------------------------------------------------------------------
def conv1d_toeplitz_np(w, b, l_in, pad):
    """Lower Conv1d(C->O, k, padding=pad, stride=1) to a dense matrix.

    w: (O, C, k), b: (O,).  Returns
      T     : (O*l_out, C*l_in)  so that  flat_out = T @ flat_in + b_col
      b_col : (O*l_out, 1)
    with channel-major flattening on both sides (matches torch .view(B, -1)).
    """
    O, C, KK = w.shape
    l_out = l_in + 2 * pad - KK + 1
    T = np.zeros((O * l_out, C * l_in), np.float32)
    for o in range(O):
        for c in range(C):
            for k in range(KK):
                for u in range(l_out):
                    t = u + k - pad
                    if 0 <= t < l_in:
                        T[o * l_out + u, c * l_in + t] = float(w[o, c, k])
    b_col = np.repeat(np.asarray(b, np.float32), l_out).reshape(O * l_out, 1)
    return T, b_col


def lower_params(params):
    """One-time lowering of PyTorch-shaped params to kernel-ready operands."""
    (w1, b1, w2, b2, wl1, bl1, wl2, bl2, wl3, bl3, wo, bo) = params
    t1, b1c = conv1d_toeplitz_np(np.asarray(w1), np.asarray(b1), L, PAD)   # (75,14),(75,1)
    t2, b2c = conv1d_toeplitz_np(np.asarray(w2), np.asarray(b2), L1, PAD)  # (32,75),(32,1)
    return (
        jnp.asarray(t1), jnp.asarray(b1c),
        jnp.asarray(t2), jnp.asarray(b2c),
        wl1, bl1.reshape(-1, 1),
        wl2, bl2.reshape(-1, 1),
        wl3, bl3.reshape(-1, 1),
        wo.reshape(-1, 1), bo.reshape(1, 1),
    )


def _pick_tb(batch):
    """Lane-dense batch tile: multiple of 128, <=1024, >=2 grid steps when
    the batch allows (keeps 'parallel' meaningful on v7x's 2 TensorCores)."""
    tb = 1024
    while tb > 128 and batch <= tb:
        tb //= 2
    return tb


# ---------------------------------------------------------------------------
# Wrapper
# ---------------------------------------------------------------------------
def net_forward(x, ops, tb=None):
    """x: (B, 14) f32.  ops: output of lower_params.  Returns (B, 1)."""
    B, Lx = x.shape
    assert Lx == L, x.shape
    tb = tb or _pick_tb(B)
    b_pad = pl.cdiv(B, tb) * tb

    # Feature-major, zero-padded batch in the lane dimension.
    x_t = jnp.pad(x.astype(jnp.float32), ((0, b_pad - B), (0, 0))).T   # (14, b_pad)

    const_specs = [pl.BlockSpec(a.shape, lambda i: (0, 0)) for a in ops]
    in_specs = [pl.BlockSpec((L, tb), lambda i: (0, i))] + const_specs

    out = pl.pallas_call(
        net_kernel,
        out_shape=jax.ShapeDtypeStruct((1, b_pad), jnp.float32),
        grid=(b_pad // tb,),
        in_specs=in_specs,
        out_specs=pl.BlockSpec((1, tb), lambda i: (0, i)),
        compiler_params=pltpu.CompilerParams(
            dimension_semantics=("parallel",)),
    )(x_t, *ops)

    return out[0, :B][:, None]                                          # (B, 1)


# ---------------------------------------------------------------------------
# Deterministic PyTorch-shaped params + pure-JAX reference
# ---------------------------------------------------------------------------
def init_params(key):
    ks = jax.random.split(key, 12)

    def u(k, shape, fan_in):
        bound = 1.0 / (fan_in ** 0.5)
        return jax.random.uniform(k, shape, jnp.float32, -bound, bound)

    w1 = u(ks[0], (C1, 1, K), 1 * K);    b1 = u(ks[1], (C1,), 1 * K)
    w2 = u(ks[2], (C2, C1, K), C1 * K);  b2 = u(ks[3], (C2,), C1 * K)
    wl1 = u(ks[4], (64, 32), 32);        bl1 = u(ks[5], (64,), 32)
    wl2 = u(ks[6], (16, 64), 64);        bl2 = u(ks[7], (16,), 64)
    wl3 = u(ks[8], (8, 16), 16);         bl3 = u(ks[9], (8,), 16)
    wo = u(ks[10], (1, 8), 8);           bo = u(ks[11], (1,), 8)
    return (w1, b1, w2, b2, wl1, bl1, wl2, bl2, wl3, bl3, wo, bo)


def ref_forward(x, params):
    """Pure-JAX reference mirroring the PyTorch module exactly."""
    (w1, b1, w2, b2, wl1, bl1, wl2, bl2, wl3, bl3, wo, bo) = params
    h = x[:, None, :]  # (B, 1, L)  NCL
    h = jax.lax.conv_general_dilated(h, w1, window_strides=(1,), padding=[(PAD, PAD)],
                                     dimension_numbers=("NCH", "OIH", "NCH"))
    h = jax.nn.relu(h + b1[None, :, None])
    h = jax.lax.conv_general_dilated(h, w2, window_strides=(1,), padding=[(PAD, PAD)],
                                     dimension_numbers=("NCH", "OIH", "NCH"))
    h = jax.nn.relu(h + b2[None, :, None])
    h = h.reshape(h.shape[0], -1)                 # (B, 32) channel-major, like .view
    h = jax.nn.relu(h @ wl1.T + bl1)
    h = jax.nn.relu(h @ wl2.T + bl2)
    h = jax.nn.relu(h @ wl3.T + bl3)
    return h @ wo.T + bo


if __name__ == "__main__":
    B = 8
    key = jax.random.PRNGKey(0)
    kx, kp = jax.random.split(key)
    x = jax.random.normal(kx, (B, L), jnp.float32)
    params = init_params(kp)

    ops = lower_params(params)        # one-time host-side Toeplitz lowering
    out = net_forward(x, ops)
    out = jax.block_until_ready(out)

    ref = ref_forward(x, params)
    assert out.shape == (B, 1), out.shape
    assert jnp.allclose(out, ref, atol=1e-3, rtol=1e-3), (out, ref)
    print("KERNEL_OK")
</pallas_src>

<mosaic_0001>
module attributes {stable_mosaic.version = 11 : i64} {
  func.func @net_kernel(%arg0: i32, %arg1: memref<14x128xf32, #tpu.memory_space<vmem>>, %arg2: memref<75x14xf32, #tpu.memory_space<vmem>>, %arg3: memref<75x1xf32, #tpu.memory_space<vmem>>, %arg4: memref<32x75xf32, #tpu.memory_space<vmem>>, %arg5: memref<32x1xf32, #tpu.memory_space<vmem>>, %arg6: memref<64x32xf32, #tpu.memory_space<vmem>>, %arg7: memref<64x1xf32, #tpu.memory_space<vmem>>, %arg8: memref<16x64xf32, #tpu.memory_space<vmem>>, %arg9: memref<16x1xf32, #tpu.memory_space<vmem>>, %arg10: memref<8x16xf32, #tpu.memory_space<vmem>>, %arg11: memref<8x1xf32, #tpu.memory_space<vmem>>, %arg12: memref<8x1xf32, #tpu.memory_space<vmem>>, %arg13: memref<1x1xf32, #tpu.memory_space<vmem>>, %arg14: memref<1x128xf32, #tpu.memory_space<vmem>>) attributes {dimension_semantics = [#tpu.dimension_semantics<parallel>], iteration_bounds = array<i64: 1>, scalar_prefetch = 0 : i64, scratch_operands = 0 : i64, tpu.core_type = #tpu.core_type<tc>, window_params = [{transform_indices = @transform_0, window_bounds = array<i64: 14, 128>}, {pipeline_mode = #tpu.pipeline_mode<synchronous>, transform_indices = @transform_1, window_bounds = array<i64: 75, 14>}, {pipeline_mode = #tpu.pipeline_mode<synchronous>, transform_indices = @transform_2, window_bounds = array<i64: 75, 1>}, {pipeline_mode = #tpu.pipeline_mode<synchronous>, transform_indices = @transform_3, window_bounds = array<i64: 32, 75>}, {pipeline_mode = #tpu.pipeline_mode<synchronous>, transform_indices = @transform_4, window_bounds = array<i64: 32, 1>}, {pipeline_mode = #tpu.pipeline_mode<synchronous>, transform_indices = @transform_5, window_bounds = array<i64: 64, 32>}, {pipeline_mode = #tpu.pipeline_mode<synchronous>, transform_indices = @transform_6, window_bounds = array<i64: 64, 1>}, {pipeline_mode = #tpu.pipeline_mode<synchronous>, transform_indices = @transform_7, window_bounds = array<i64: 16, 64>}, {pipeline_mode = #tpu.pipeline_mode<synchronous>, transform_indices = @transform_8, window_bounds = array<i64: 16, 1>}, {pipeline_mode = #tpu.pipeline_mode<synchronous>, transform_indices = @transform_9, window_bounds = array<i64: 8, 16>}, {pipeline_mode = #tpu.pipeline_mode<synchronous>, transform_indices = @transform_10, window_bounds = array<i64: 8, 1>}, {pipeline_mode = #tpu.pipeline_mode<synchronous>, transform_indices = @transform_11, window_bounds = array<i64: 8, 1>}, {pipeline_mode = #tpu.pipeline_mode<synchronous>, transform_indices = @transform_12, window_bounds = array<i64: 1, 1>}, {transform_indices = @transform_13, window_bounds = array<i64: 1, 128>}]} {
    %c0 = arith.constant 0 : index
    %c0_0 = arith.constant 0 : index
    %0 = vector.load %arg1[%c0, %c0_0] : memref<14x128xf32, #tpu.memory_space<vmem>>, vector<14x128xf32>
    %c0_1 = arith.constant 0 : index
    %c0_2 = arith.constant 0 : index
    %1 = vector.load %arg2[%c0_1, %c0_2] : memref<75x14xf32, #tpu.memory_space<vmem>>, vector<75x14xf32>
    %cst = arith.constant dense<0.000000e+00> : vector<75x128xf32>
    %2 = tpu.matmul %1, %0, %cst {dimension_numbers = #tpu.dot_dimension_numbers<[1], [0], [0], [1], [0, 0, 1, 1], [], []>} : vector<75x14xf32>, vector<14x128xf32>, vector<75x128xf32> -> vector<75x128xf32>
    %c0_3 = arith.constant 0 : index
    %c0_4 = arith.constant 0 : index
    %3 = vector.load %arg3[%c0_3, %c0_4] : memref<75x1xf32, #tpu.memory_space<vmem>>, vector<75x1xf32>
    %4 = vector.broadcast %3 : vector<75x1xf32> to vector<75x128xf32>
    %5 = arith.addf %2, %4 : vector<75x128xf32>
    %cst_5 = arith.constant 0.000000e+00 : f32
    %6 = vector.broadcast %cst_5 : f32 to vector<75x128xf32>
    %7 = arith.maximumf %5, %6 : vector<75x128xf32>
    %c0_6 = arith.constant 0 : index
    %c0_7 = arith.constant 0 : index
    %8 = vector.load %arg4[%c0_6, %c0_7] : memref<32x75xf32, #tpu.memory_space<vmem>>, vector<32x75xf32>
    %cst_8 = arith.constant dense<0.000000e+00> : vector<32x128xf32>
    %9 = tpu.matmul %8, %7, %cst_8 {dimension_numbers = #tpu.dot_dimension_numbers<[1], [0], [0], [1], [0, 0, 1, 1], [], []>} : vector<32x75xf32>, vector<75x128xf32>, vector<32x128xf32> -> vector<32x128xf32>
    %c0_9 = arith.constant 0 : index
    %c0_10 = arith.constant 0 : index
    %10 = vector.load %arg5[%c0_9, %c0_10] : memref<32x1xf32, #tpu.memory_space<vmem>>, vector<32x1xf32>
    %11 = vector.broadcast %10 : vector<32x1xf32> to vector<32x128xf32>
    %12 = arith.addf %9, %11 : vector<32x128xf32>
    %cst_11 = arith.constant 0.000000e+00 : f32
    %13 = vector.broadcast %cst_11 : f32 to vector<32x128xf32>
    %14 = arith.maximumf %12, %13 : vector<32x128xf32>
    %c0_12 = arith.constant 0 : index
    %c0_13 = arith.constant 0 : index
    %15 = vector.load %arg6[%c0_12, %c0_13] : memref<64x32xf32, #tpu.memory_space<vmem>>, vector<64x32xf32>
    %cst_14 = arith.constant dense<0.000000e+00> : vector<64x128xf32>
    %16 = tpu.matmul %15, %14, %cst_14 {dimension_numbers = #tpu.dot_dimension_numbers<[1], [0], [0], [1], [0, 0, 1, 1], [], []>} : vector<64x32xf32>, vector<32x128xf32>, vector<64x128xf32> -> vector<64x128xf32>
    %c0_15 = arith.constant 0 : index
    %c0_16 = arith.constant 0 : index
    %17 = vector.load %arg7[%c0_15, %c0_16] : memref<64x1xf32, #tpu.memory_space<vmem>>, vector<64x1xf32>
    %18 = vector.broadcast %17 : vector<64x1xf32> to vector<64x128xf32>
    %19 = arith.addf %16, %18 : vector<64x128xf32>
    %cst_17 = arith.constant 0.000000e+00 : f32
    %20 = vector.broadcast %cst_17 : f32 to vector<64x128xf32>
    %21 = arith.maximumf %19, %20 : vector<64x128xf32>
    %c0_18 = arith.constant 0 : index
    %c0_19 = arith.constant 0 : index
    %22 = vector.load %arg8[%c0_18, %c0_19] : memref<16x64xf32, #tpu.memory_space<vmem>>, vector<16x64xf32>
    %cst_20 = arith.constant dense<0.000000e+00> : vector<16x128xf32>
    %23 = tpu.matmul %22, %21, %cst_20 {dimension_numbers = #tpu.dot_dimension_numbers<[1], [0], [0], [1], [0, 0, 1, 1], [], []>} : vector<16x64xf32>, vector<64x128xf32>, vector<16x128xf32> -> vector<16x128xf32>
    %c0_21 = arith.constant 0 : index
    %c0_22 = arith.constant 0 : index
    %24 = vector.load %arg9[%c0_21, %c0_22] : memref<16x1xf32, #tpu.memory_space<vmem>>, vector<16x1xf32>
    %25 = vector.broadcast %24 : vector<16x1xf32> to vector<16x128xf32>
    %26 = arith.addf %23, %25 : vector<16x128xf32>
    %cst_23 = arith.constant 0.000000e+00 : f32
    %27 = vector.broadcast %cst_23 : f32 to vector<16x128xf32>
    %28 = arith.maximumf %26, %27 : vector<16x128xf32>
    %c0_24 = arith.constant 0 : index
    %c0_25 = arith.constant 0 : index
    %29 = vector.load %arg10[%c0_24, %c0_25] : memref<8x16xf32, #tpu.memory_space<vmem>>, vector<8x16xf32>
    %cst_26 = arith.constant dense<0.000000e+00> : vector<8x128xf32>
    %30 = tpu.matmul %29, %28, %cst_26 {dimension_numbers = #tpu.dot_dimension_numbers<[1], [0], [0], [1], [0, 0, 1, 1], [], []>} : vector<8x16xf32>, vector<16x128xf32>, vector<8x128xf32> -> vector<8x128xf32>
    %c0_27 = arith.constant 0 : index
    %c0_28 = arith.constant 0 : index
    %31 = vector.load %arg11[%c0_27, %c0_28] : memref<8x1xf32, #tpu.memory_space<vmem>>, vector<8x1xf32>
    %32 = vector.broadcast %31 : vector<8x1xf32> to vector<8x128xf32>
    %33 = arith.addf %30, %32 : vector<8x128xf32>
    %cst_29 = arith.constant 0.000000e+00 : f32
    %34 = vector.broadcast %cst_29 : f32 to vector<8x128xf32>
    %35 = arith.maximumf %33, %34 : vector<8x128xf32>
    %c0_30 = arith.constant 0 : index
    %c0_31 = arith.constant 0 : index
    %36 = vector.load %arg12[%c0_30, %c0_31] : memref<8x1xf32, #tpu.memory_space<vmem>>, vector<8x1xf32>
    %37 = vector.broadcast %36 : vector<8x1xf32> to vector<8x128xf32>
    %38 = arith.mulf %35, %37 : vector<8x128xf32>
    %cst_32 = arith.constant dense<0.000000e+00> : vector<128xf32>
    %39 = vector.multi_reduction <add>, %38, %cst_32 [0] : vector<8x128xf32> to vector<128xf32>
    %40 = vector.shape_cast %39 : vector<128xf32> to vector<1x128xf32>
    %c0_33 = arith.constant 0 : index
    %c0_34 = arith.constant 0 : index
    %41 = vector.load %arg13[%c0_33, %c0_34] : memref<1x1xf32, #tpu.memory_space<vmem>>, vector<1x1xf32>
    %42 = vector.broadcast %41 : vector<1x1xf32> to vector<1x128xf32>
    %43 = arith.addf %40, %42 : vector<1x128xf32>
    %c0_35 = arith.constant 0 : index
    %c0_36 = arith.constant 0 : index
    %44 = vector.load %arg14[%c0_35, %c0_36] : memref<1x128xf32, #tpu.memory_space<vmem>>, vector<1x128xf32>
    tpu.vector_store %arg14[%c0_35, %c0_36], %43 {strides = array<i32>} : memref<1x128xf32, #tpu.memory_space<vmem>>, vector<1x128xf32>,
    return
  }
  func.func @transform_0(%arg0: i32) -> (i32, i32) {
    %c0_i32 = arith.constant 0 : i32
    %c0_i32_0 = arith.constant 0 : i32
    return %c0_i32, %arg0 : i32, i32
  }
  func.func @transform_1(%arg0: i32) -> (i32, i32) {
    %c0_i32 = arith.constant 0 : i32
    %c0_i32_0 = arith.constant 0 : i32
    %c0_i32_1 = arith.constant 0 : i32
    return %c0_i32, %c0_i32_0 : i32, i32
  }
  func.func @transform_2(%arg0: i32) -> (i32, i32) {
    %c0_i32 = arith.constant 0 : i32
    %c0_i32_0 = arith.constant 0 : i32
    %c0_i32_1 = arith.constant 0 : i32
    return %c0_i32, %c0_i32_0 : i32, i32
  }
  func.func @transform_3(%arg0: i32) -> (i32, i32) {
    %c0_i32 = arith.constant 0 : i32
    %c0_i32_0 = arith.constant 0 : i32
    %c0_i32_1 = arith.constant 0 : i32
    return %c0_i32, %c0_i32_0 : i32, i32
  }
  func.func @transform_4(%arg0: i32) -> (i32, i32) {
    %c0_i32 = arith.constant 0 : i32
    %c0_i32_0 = arith.constant 0 : i32
    %c0_i32_1 = arith.constant 0 : i32
    return %c0_i32, %c0_i32_0 : i32, i32
  }
  func.func @transform_5(%arg0: i32) -> (i32, i32) {
    %c0_i32 = arith.constant 0 : i32
    %c0_i32_0 = arith.constant 0 : i32
    %c0_i32_1 = arith.constant 0 : i32
    return %c0_i32, %c0_i32_0 : i32, i32
  }
  func.func @transform_6(%arg0: i32) -> (i32, i32) {
    %c0_i32 = arith.constant 0 : i32
    %c0_i32_0 = arith.constant 0 : i32
    %c0_i32_1 = arith.constant 0 : i32
    return %c0_i32, %c0_i32_0 : i32, i32
  }
  func.func @transform_7(%arg0: i32) -> (i32, i32) {
    %c0_i32 = arith.constant 0 : i32
    %c0_i32_0 = arith.constant 0 : i32
    %c0_i32_1 = arith.constant 0 : i32
    return %c0_i32, %c0_i32_0 : i32, i32
  }
  func.func @transform_8(%arg0: i32) -> (i32, i32) {
    %c0_i32 = arith.constant 0 : i32
    %c0_i32_0 = arith.constant 0 : i32
    %c0_i32_1 = arith.constant 0 : i32
    return %c0_i32, %c0_i32_0 : i32, i32
  }
  func.func @transform_9(%arg0: i32) -> (i32, i32) {
    %c0_i32 = arith.constant 0 : i32
    %c0_i32_0 = arith.constant 0 : i32
    %c0_i32_1 = arith.constant 0 : i32
    return %c0_i32, %c0_i32_0 : i32, i32
  }
  func.func @transform_10(%arg0: i32) -> (i32, i32) {
    %c0_i32 = arith.constant 0 : i32
    %c0_i32_0 = arith.constant 0 : i32
    %c0_i32_1 = arith.constant 0 : i32
    return %c0_i32, %c0_i32_0 : i32, i32
  }
  func.func @transform_11(%arg0: i32) -> (i32, i32) {
    %c0_i32 = arith.constant 0 : i32
    %c0_i32_0 = arith.constant 0 : i32
    %c0_i32_1 = arith.constant 0 : i32
    return %c0_i32, %c0_i32_0 : i32, i32
  }
  func.func @transform_12(%arg0: i32) -> (i32, i32) {
    %c0_i32 = arith.constant 0 : i32
    %c0_i32_0 = arith.constant 0 : i32
    %c0_i32_1 = arith.constant 0 : i32
    return %c0_i32, %c0_i32_0 : i32, i32
  }
  func.func @transform_13(%arg0: i32) -> (i32, i32) {
    %c0_i32 = arith.constant 0 : i32
    %c0_i32_0 = arith.constant 0 : i32
    return %c0_i32, %arg0 : i32, i32
  }
}

</mosaic_0001>

<llo_original>
// kernel: tpu_custom_call.1
$region0: #{tpu_custom_call.1}
  #allocation0 [shape = 'u32[]', space=smem, size = 0x4, offset = 0x4, fixed_abs, tag = 'smem constant byte address 0x4 - core index']
  #allocation1 [shape = 'u32[72,128]{1,0:T(1,128)}', space=vmem, size = 0x9000, scoped, tag = 'internal scratch']
  #allocation2 [shape = 'f32[1,1]{1,0:T(1,128)S(1)}', space=vmem, size = 0x200, scoped, tag = 'scoped memory for tpu_custom_call.1']
  %s0 = inlined_call_operand.vmem [shape: f32[14,128], index: 0, kind: input, shape index: {}]
  %s1 = inlined_call_operand.vmem [shape: f32[75,14], index: 1, kind: input, shape index: {}]
  %s2 = inlined_call_operand.vmem [shape: f32[75,1], index: 2, kind: input, shape index: {}]
  %s3 = inlined_call_operand.vmem [shape: f32[32,75], index: 3, kind: input, shape index: {}]
  %s4 = inlined_call_operand.vmem [shape: f32[32,1], index: 4, kind: input, shape index: {}]
  %s5 = inlined_call_operand.vmem [shape: f32[64,32], index: 5, kind: input, shape index: {}]
  %s6 = inlined_call_operand.vmem [shape: f32[64,1], index: 6, kind: input, shape index: {}]
  %s7 = inlined_call_operand.vmem [shape: f32[16,64], index: 7, kind: input, shape index: {}]
  %s8 = inlined_call_operand.vmem [shape: f32[16,1], index: 8, kind: input, shape index: {}]
  %s9 = inlined_call_operand.vmem [shape: f32[8,16], index: 9, kind: input, shape index: {}]
  %s10 = inlined_call_operand.vmem [shape: f32[8,1], index: 10, kind: input, shape index: {}]
  %s11 = inlined_call_operand.vmem [shape: f32[8,1], index: 11, kind: input, shape index: {}]
  %s12 = inlined_call_operand.<no memory space> [shape: f32[1,1], index: 12, kind: input, shape index: {}]
  %s13 = inlined_call_operand.hbm [shape: f32[1,128], index: 13, kind: output, shape index: {}]
  %s14 = sld [smem:[#allocation0]]
  $region62: #{tpu_custom_call.1} parent=0
    _
  %s16 = ssub.s32 1, %s14
  %s17 = scalar_select 0, %s16, %s14
  %v18 = vstv %s12
  %19 = vst [vmem:[#allocation2] sm:$0x1] %v18
  $region1: #{tpu_custom_call.1} parent=0
    #allocation3 [shape = 'u8[512]{0}', space=vmem, size = 0x400, scoped, tag = 'output window, operand 0, single buffered']
    #allocation4 [shape = 's32[1]{0}', space=sflag, size = 0x4, scoped, tag = 'scoped memory for tpu_custom_call.1']
    %20 = vsyncpa [#allocation4], 0
    // Predicated region
    $region2: #{tpu_custom_call.1} parent=1 // pred_check
      _
    $region3: #{tpu_custom_call.1} parent=1 // pred_check_branch
      %22 = sbr.rel (0) target = $region5
    $region4: #{tpu_custom_call.1} parent=1 // pred_region
      _
    $region5: #{tpu_custom_call.1} parent=1 // pred_fallthru
      _
    // Predicated region
    $region6: #{tpu_custom_call.1} parent=1 // pred_check
      _
    $region7: #{tpu_custom_call.1} parent=1 // pred_check_branch
      %24 = sbr.rel (0) target = $region9
    $region8: #{tpu_custom_call.1} parent=1 // pred_region
      _
    $region9: #{tpu_custom_call.1} parent=1 // pred_fallthru
      _
    // Predicated region
    $region10: #{tpu_custom_call.1} parent=1 // pred_check
      _
    $region11: #{tpu_custom_call.1} parent=1 // pred_check_branch
      %26 = sbr.rel (0) target = $region13
    $region12: #{tpu_custom_call.1} parent=1 // pred_region
      _
    $region13: #{tpu_custom_call.1} parent=1 // pred_fallthru
      _
    // Predicated region
    $region14: #{tpu_custom_call.1} parent=1 // pred_check
      _
    $region15: #{tpu_custom_call.1} parent=1 // pred_check_branch
      %28 = sbr.rel (0) target = $region17
    $region16: #{tpu_custom_call.1} parent=1 // pred_region
      _
    $region17: #{tpu_custom_call.1} parent=1 // pred_fallthru
      _
    // Predicated region
    $region18: #{tpu_custom_call.1} parent=1 // pred_check
      _
    $region19: #{tpu_custom_call.1} parent=1 // pred_check_branch
      %30 = sbr.rel (0) target = $region21
    $region20: #{tpu_custom_call.1} parent=1 // pred_region
      _
    $region21: #{tpu_custom_call.1} parent=1 // pred_fallthru
      _
    // Predicated region
    $region22: #{tpu_custom_call.1} parent=1 // pred_check
      _
    $region23: #{tpu_custom_call.1} parent=1 // pred_check_branch
      %32 = sbr.rel (0) target = $region25
    $region24: #{tpu_custom_call.1} parent=1 // pred_region
      _
    $region25: #{tpu_custom_call.1} parent=1 // pred_fallthru
      _
    // Predicated region
    $region26: #{tpu_custom_call.1} parent=1 // pred_check
      _
    $region27: #{tpu_custom_call.1} parent=1 // pred_check_branch
      %34 = sbr.rel (0) target = $region29
    $region28: #{tpu_custom_call.1} parent=1 // pred_region
      _
    $region29: #{tpu_custom_call.1} parent=1 // pred_fallthru
      _
    // Predicated region
    $region30: #{tpu_custom_call.1} parent=1 // pred_check
      _
    $region31: #{tpu_custom_call.1} parent=1 // pred_check_branch
      %36 = sbr.rel (0) target = $region33
    $region32: #{tpu_custom_call.1} parent=1 // pred_region
      _
    $region33: #{tpu_custom_call.1} parent=1 // pred_fallthru
      _
    // Predicated region
    $region34: #{tpu_custom_call.1} parent=1 // pred_check
      _
    $region35: #{tpu_custom_call.1} parent=1 // pred_check_branch
      %38 = sbr.rel (0) target = $region37
    $region36: #{tpu_custom_call.1} parent=1 // pred_region
      _
    $region37: #{tpu_custom_call.1} parent=1 // pred_fallthru
      _
    // Predicated region
    $region38: #{tpu_custom_call.1} parent=1 // pred_check
      _
    $region39: #{tpu_custom_call.1} parent=1 // pred_check_branch
      %40 = sbr.rel (0) target = $region41
    $region40: #{tpu_custom_call.1} parent=1 // pred_region
      _
    $region41: #{tpu_custom_call.1} parent=1 // pred_fallthru
      _
    // Predicated region
    $region42: #{tpu_custom_call.1} parent=1 // pred_check
      _
    $region43: #{tpu_custom_call.1} parent=1 // pred_check_branch
      %42 = sbr.rel (0) target = $region45
    $region44: #{tpu_custom_call.1} parent=1 // pred_region
      _
    $region45: #{tpu_custom_call.1} parent=1 // pred_fallthru
      _
    // Predicated region
    $region46: #{tpu_custom_call.1} parent=1 // pred_check
      _
    $region47: #{tpu_custom_call.1} parent=1 // pred_check_branch
      %44 = sbr.rel (0) target = $region49
    $region48: #{tpu_custom_call.1} parent=1 // pred_region
      _
    $region49: #{tpu_custom_call.1} parent=1 // pred_fallthru
      _
    // Predicated region
    $region50: #{tpu_custom_call.1} parent=1 // pred_check
      _
    $region51: #{tpu_custom_call.1} parent=1 // pred_check_branch
      %46 = sbr.rel (0) target = $region53
    $region52: #{tpu_custom_call.1} parent=1 // pred_region
      _
    $region53: #{tpu_custom_call.1} parent=1 // pred_fallthru
      _
    %v47 = vld [vmem:[%s0] sm:$0xff]
    %v48 = vld [vmem:[%s0 + $0x8] sm:$0x3f]
    %v49 = vld [vmem:[%s1] sm:$0xff]
    %v50 = vld [vmem:[%s1 + $0x8] sm:$0xff]
    %v51 = vld [vmem:[%s1 + $0x10] sm:$0xff]
    %v52 = vld [vmem:[%s1 + $0x18] sm:$0xff]
    %v53 = vld [vmem:[%s1 + $0x20] sm:$0xff]
    %v54 = vld [vmem:[%s1 + $0x28] sm:$0xff]
    %v55 = vld [vmem:[%s1 + $0x30] sm:$0xff]
    %v56 = vld [vmem:[%s1 + $0x38] sm:$0xff]
    %v57 = vld [vmem:[%s1 + $0x40] sm:$0xff]
    %v58 = vld [vmem:[%s1 + $0x48] sm:$0x7]
    %v59 = vld [vmem:[%s2] sm:$0xff]
    %v60 = vld [vmem:[%s2 + $0x8] sm:$0xff]
    %v61 = vld [vmem:[%s2 + $0x10] sm:$0xff]
    %v62 = vld [vmem:[%s2 + $0x18] sm:$0xff]
    %v63 = vld [vmem:[%s2 + $0x20] sm:$0xff]
    %v64 = vld [vmem:[%s2 + $0x28] sm:$0xff]
    %v65 = vld [vmem:[%s2 + $0x30] sm:$0xff]
    %v66 = vld [vmem:[%s2 + $0x38] sm:$0xff]
    %v67 = vld [vmem:[%s2 + $0x40] sm:$0xff]
    %v68 = vld [vmem:[%s2 + $0x48] sm:$0x7]
    %70 = vset.pattern.permute.xlu0 0
    %71 = vperm.xlu0 %70, %v59
    %v72 = vpop.permute.xlu0 %71
    %75 = vset.pattern.permute.xlu0 0
    %76 = vperm.xlu0 %75, %v60
    %v77 = vpop.permute.xlu0 %76
    %80 = vset.pattern.permute.xlu0 0
    %81 = vperm.xlu0 %80, %v61
    %v82 = vpop.permute.xlu0 %81
    %85 = vset.pattern.permute.xlu0 0
    %86 = vperm.xlu0 %85, %v62
    %v87 = vpop.permute.xlu0 %86
    %90 = vset.pattern.permute.xlu0 0
    %91 = vperm.xlu0 %90, %v63
    %v92 = vpop.permute.xlu0 %91
    %95 = vset.pattern.permute.xlu0 0
    %96 = vperm.xlu0 %95, %v64
    %v97 = vpop.permute.xlu0 %96
    %100 = vset.pattern.permute.xlu0 0
    %101 = vperm.xlu0 %100, %v65
    %v102 = vpop.permute.xlu0 %101
    %105 = vset.pattern.permute.xlu0 0
    %106 = vperm.xlu0 %105, %v66
    %v107 = vpop.permute.xlu0 %106
    %110 = vset.pattern.permute.xlu0 0
    %111 = vperm.xlu0 %110, %v67
    %v112 = vpop.permute.xlu0 %111
    %115 = vset.pattern.permute.xlu0 0
    %116 = vperm.xlu0 %115, %v68
    %v117 = vpop.permute.xlu0 %116
    %vm119 = vcmask 113664
    %v121 = vsel %vm119, %v49, 0
    %v124 = vsel %vm119, %v50, 0
    %v127 = vsel %vm119, %v51, 0
    %v130 = vsel %vm119, %v52, 0
    %v133 = vsel %vm119, %v53, 0
    %v136 = vsel %vm119, %v54, 0
    %v139 = vsel %vm119, %v55, 0
    %v142 = vsel %vm119, %v56, 0
    %v145 = vsel %vm119, %v57, 0
    %v148 = vsel %vm119, %v58, 0
    %vm150 = vcmask 1045504
    %v152 = vsel %vm150, %v48, 0
    %154 = vmatpush.msra.mxu0 0.0
    %155 = vmatpush.msra.mxu0 0.0
    %156 = vmatpush.msra.mxu0 0.0
    %157 = vmatpush.msra.mxu0 0.0
    %158 = vmatpush.msra.mxu0 0.0
    %159 = vmatpush.msra.mxu0 0.0
    %160 = vmatpush.msra.mxu0 0.0
    %161 = vmatpush.msra.mxu0 0.0
    %162 = vmatpush.msra.mxu0 0.0
    %163 = vmatpush.msra.mxu0 0.0
    %164 = vmatpush.msra.mxu0 0.0
    %165 = vmatpush.msra.mxu0 0.0
    %166 = vmatpush.msra.mxu0 0.0
    %167 = vmatpush.msra.mxu0 0.0
    %168 = vmatpush.msra.mxu0 %v152
    %169 = vmatpush.msra.mxu0 %v47
    %170 = vmatmul.f32.gmra.mxu0 %v121
    %v171 = vpop.f32.mrf.mxu0
    %v172 = vadd.f32 %v72, %v171
    %173 = vmatmul.f32.gmra.mxu0 %v124
    %v174 = vpop.f32.mrf.mxu0
    %v175 = vadd.f32 %v77, %v174
    %176 = vmatmul.f32.gmra.mxu0 %v127
    %v177 = vpop.f32.mrf.mxu0
    %v178 = vadd.f32 %v82, %v177
    %179 = vmatmul.f32.gmra.mxu0 %v130
    %v180 = vpop.f32.mrf.mxu0
    %v181 = vadd.f32 %v87, %v180
    %182 = vmatmul.f32.gmra.mxu0 %v133
    %v183 = vpop.f32.mrf.mxu0
    %v184 = vadd.f32 %v92, %v183
    %185 = vmatmul.f32.gmra.mxu0 %v136
    %v186 = vpop.f32.mrf.mxu0
    %v187 = vadd.f32 %v97, %v186
    %188 = vmatmul.f32.gmra.mxu0 %v139
    %v189 = vpop.f32.mrf.mxu0
    %v190 = vadd.f32 %v102, %v189
    %191 = vmatmul.f32.gmra.mxu0 %v142
    %v192 = vpop.f32.mrf.mxu0
    %v193 = vadd.f32 %v107, %v192
    %194 = vmatmul.f32.gmra.mxu0 %v145
    %v195 = vpop.f32.mrf.mxu0
    %v196 = vadd.f32 %v112, %v195
    %197 = vmatmul.f32.gmra.mxu0 %v148
    %v198 = vpop.f32.mrf.mxu0
    %v199 = vadd.f32 %v117, %v198
    %200 = vdwg.mxu0
    %v201 = vmax.f32 %v172, 0.0
    %v202 = vmax.f32 %v175, 0.0
    %v203 = vmax.f32 %v178, 0.0
    %v204 = vmax.f32 %v181, 0.0
    %v205 = vmax.f32 %v184, 0.0
    %v206 = vmax.f32 %v187, 0.0
    %v207 = vmax.f32 %v190, 0.0
    %v208 = vmax.f32 %v193, 0.0
    %v209 = vmax.f32 %v196, 0.0
    %v210 = vmax.f32 %v199, 0.0
    %v211 = vld [vmem:[%s3] sm:$0xff]
    %v212 = vld [vmem:[%s3 + $0x8] sm:$0xff]
    %v213 = vld [vmem:[%s3 + $0x10] sm:$0xff]
    %v214 = vld [vmem:[%s3 + $0x18] sm:$0xff]
    %v215 = vld [vmem:[%s4] sm:$0xff]
    %v216 = vld [vmem:[%s4 + $0x8] sm:$0xff]
    %v217 = vld [vmem:[%s4 + $0x10] sm:$0xff]
    %v218 = vld [vmem:[%s4 + $0x18] sm:$0xff]
    %220 = vset.pattern.permute.xlu0 0
    %221 = vperm.xlu0 %220, %v215
    %v222 = vpop.permute.xlu0 %221
    %225 = vset.pattern.permute.xlu0 0
    %226 = vperm.xlu0 %225, %v216
    %v227 = vpop.permute.xlu0 %226
    %230 = vset.pattern.permute.xlu0 0
    %231 = vperm.xlu0 %230, %v217
    %v232 = vpop.permute.xlu0 %231
    %235 = vset.pattern.permute.xlu0 0
    %236 = vperm.xlu0 %235, %v218
    %v237 = vpop.permute.xlu0 %236
    %vm239 = vcmask 613376
    %v241 = vsel %vm239, %v211, 0
    %v244 = vsel %vm239, %v212, 0
    %v247 = vsel %vm239, %v213, 0
    %v250 = vsel %vm239, %v214, 0
    %vm252 = vcmask 1042432
    %v254 = vsel %vm252, %v210, 0
    %256 = vmatpush.msra.mxu0 0.0
    %257 = vmatpush.msra.mxu0 0.0
    %258 = vmatpush.msra.mxu0 0.0
    %259 = vmatpush.msra.mxu0 0.0
    %260 = vmatpush.msra.mxu0 0.0
    %261 = vmatpush.msra.mxu0 0.0
    %262 = vmatpush.msra.mxu0 %v254
    %263 = vmatpush.msra.mxu0 %v209
    %264 = vmatpush.msra.mxu0 %v208
    %265 = vmatpush.msra.mxu0 %v207
    %266 = vmatpush.msra.mxu0 %v206
    %267 = vmatpush.msra.mxu0 %v205
    %268 = vmatpush.msra.mxu0 %v204
    %269 = vmatpush.msra.mxu0 %v203
    %270 = vmatpush.msra.mxu0 %v202
    %271 = vmatpush.msra.mxu0 %v201
    %272 = vmatmul.f32.gmra.mxu0 %v241
    %v273 = vpop.f32.mrf.mxu0
    %v274 = vadd.f32 %v222, %v273
    %275 = vmatmul.f32.gmra.mxu0 %v244
    %v276 = vpop.f32.mrf.mxu0
    %v277 = vadd.f32 %v227, %v276
    %278 = vmatmul.f32.gmra.mxu0 %v247
    %v279 = vpop.f32.mrf.mxu0
    %v280 = vadd.f32 %v232, %v279
    %281 = vmatmul.f32.gmra.mxu0 %v250
    %v282 = vpop.f32.mrf.mxu0
    %v283 = vadd.f32 %v237, %v282
    %284 = vdwg.mxu0
    %v285 = vmax.f32 %v274, 0.0
    %v286 = vmax.f32 %v277, 0.0
    %v287 = vmax.f32 %v280, 0.0
    %v288 = vmax.f32 %v283, 0.0
    %v289 = vld [vmem:[%s5] sm:$0xff]
    %v290 = vld [vmem:[%s5 + $0x8] sm:$0xff]
    %v291 = vld [vmem:[%s5 + $0x10] sm:$0xff]
    %v292 = vld [vmem:[%s5 + $0x18] sm:$0xff]
    %v293 = vld [vmem:[%s5 + $0x20] sm:$0xff]
    %v294 = vld [vmem:[%s5 + $0x28] sm:$0xff]
    %v295 = vld [vmem:[%s5 + $0x30] sm:$0xff]
    %v296 = vld [vmem:[%s5 + $0x38] sm:$0xff]
    %v297 = vld [vmem:[%s6] sm:$0xff]
    %v298 = vld [vmem:[%s6 + $0x8] sm:$0xff]
    %v299 = vld [vmem:[%s6 + $0x10] sm:$0xff]
    %v300 = vld [vmem:[%s6 + $0x18] sm:$0xff]
    %v301 = vld [vmem:[%s6 + $0x20] sm:$0xff]
    %v302 = vld [vmem:[%s6 + $0x28] sm:$0xff]
    %v303 = vld [vmem:[%s6 + $0x30] sm:$0xff]
    %v304 = vld [vmem:[%s6 + $0x38] sm:$0xff]
    %306 = vset.pattern.permute.xlu0 0
    %307 = vperm.xlu0 %306, %v297
    %v308 = vpop.permute.xlu0 %307
    %311 = vset.pattern.permute.xlu0 0
    %312 = vperm.xlu0 %311, %v298
    %v313 = vpop.permute.xlu0 %312
    %316 = vset.pattern.permute.xlu0 0
    %317 = vperm.xlu0 %316, %v299
    %v318 = vpop.permute.xlu0 %317
    %321 = vset.pattern.permute.xlu0 0
    %322 = vperm.xlu0 %321, %v300
    %v323 = vpop.permute.xlu0 %322
    %326 = vset.pattern.permute.xlu0 0
    %327 = vperm.xlu0 %326, %v301
    %v328 = vpop.permute.xlu0 %327
    %331 = vset.pattern.permute.xlu0 0
    %332 = vperm.xlu0 %331, %v302
    %v333 = vpop.permute.xlu0 %332
    %336 = vset.pattern.permute.xlu0 0
    %337 = vperm.xlu0 %336, %v303
    %v338 = vpop.permute.xlu0 %337
    %341 = vset.pattern.permute.xlu0 0
    %342 = vperm.xlu0 %341, %v304
    %v343 = vpop.permute.xlu0 %342
    %vm345 = vcmask 261120
    %v347 = vsel %vm345, %v289, 0
    %v350 = vsel %vm345, %v290, 0
    %v353 = vsel %vm345, %v291, 0
    %v356 = vsel %vm345, %v292, 0
    %v359 = vsel %vm345, %v293, 0
    %v362 = vsel %vm345, %v294, 0
    %v365 = vsel %vm345, %v295, 0
    %v368 = vsel %vm345, %v296, 0
    %370 = vmatpush.msra.mxu0 0.0
    %371 = vmatpush.msra.mxu0 0.0
    %372 = vmatpush.msra.mxu0 0.0
    %373 = vmatpush.msra.mxu0 0.0
    %374 = vmatpush.msra.mxu0 0.0
    %375 = vmatpush.msra.mxu0 0.0
    %376 = vmatpush.msra.mxu0 0.0
    %377 = vmatpush.msra.mxu0 0.0
    %378 = vmatpush.msra.mxu0 0.0
    %379 = vmatpush.msra.mxu0 0.0
    %380 = vmatpush.msra.mxu0 0.0
    %381 = vmatpush.msra.mxu0 0.0
    %382 = vmatpush.msra.mxu0 %v288
    %383 = vmatpush.msra.mxu0 %v287
    %384 = vmatpush.msra.mxu0 %v286
    %385 = vmatpush.msra.mxu0 %v285
    %386 = vmatmul.f32.gmra.mxu0 %v347
    %v387 = vpop.f32.mrf.mxu0
    %v388 = vadd.f32 %v308, %v387
    %389 = vmatmul.f32.gmra.mxu0 %v350
    %v390 = vpop.f32.mrf.mxu0
    %v391 = vadd.f32 %v313, %v390
    %392 = vmatmul.f32.gmra.mxu0 %v353
    %v393 = vpop.f32.mrf.mxu0
    %v394 = vadd.f32 %v318, %v393
    %395 = vmatmul.f32.gmra.mxu0 %v356
    %v396 = vpop.f32.mrf.mxu0
    %v397 = vadd.f32 %v323, %v396
    %398 = vmatmul.f32.gmra.mxu0 %v359
    %v399 = vpop.f32.mrf.mxu0
    %v400 = vadd.f32 %v328, %v399
    %401 = vmatmul.f32.gmra.mxu0 %v362
    %v402 = vpop.f32.mrf.mxu0
    %v403 = vadd.f32 %v333, %v402
    %404 = vmatmul.f32.gmra.mxu0 %v365
    %v405 = vpop.f32.mrf.mxu0
    %v406 = vadd.f32 %v338, %v405
    %407 = vmatmul.f32.gmra.mxu0 %v368
    %v408 = vpop.f32.mrf.mxu0
    %v409 = vadd.f32 %v343, %v408
    %410 = vdwg.mxu0
    %v411 = vmax.f32 %v388, 0.0
    %v412 = vmax.f32 %v391, 0.0
    %v413 = vmax.f32 %v394, 0.0
    %v414 = vmax.f32 %v397, 0.0
    %v415 = vmax.f32 %v400, 0.0
    %v416 = vmax.f32 %v403, 0.0
    %v417 = vmax.f32 %v406, 0.0
    %v418 = vmax.f32 %v409, 0.0
    %v419 = vld [vmem:[%s7] sm:$0xff]
    %v420 = vld [vmem:[%s7 + $0x8] sm:$0xff]
    %v421 = vld [vmem:[%s8] sm:$0xff]
    %v422 = vld [vmem:[%s8 + $0x8] sm:$0xff]
    %424 = vset.pattern.permute.xlu0 0
    %425 = vperm.xlu0 %424, %v421
    %v426 = vpop.permute.xlu0 %425
    %429 = vset.pattern.permute.xlu0 0
    %430 = vperm.xlu0 %429, %v422
    %v431 = vpop.permute.xlu0 %430
    %vm433 = vcmask 523264
    %v435 = vsel %vm433, %v419, 0
    %v438 = vsel %vm433, %v420, 0
    %440 = vmatpush.msra.mxu0 0.0
    %441 = vmatpush.msra.mxu0 0.0
    %442 = vmatpush.msra.mxu0 0.0
    %443 = vmatpush.msra.mxu0 0.0
    %444 = vmatpush.msra.mxu0 0.0
    %445 = vmatpush.msra.mxu0 0.0
    %446 = vmatpush.msra.mxu0 0.0
    %447 = vmatpush.msra.mxu0 0.0
    %448 = vmatpush.msra.mxu0 %v418
    %449 = vmatpush.msra.mxu0 %v417
    %450 = vmatpush.msra.mxu0 %v416
    %451 = vmatpush.msra.mxu0 %v415
    %452 = vmatpush.msra.mxu0 %v414
    %453 = vmatpush.msra.mxu0 %v413
    %454 = vmatpush.msra.mxu0 %v412
    %455 = vmatpush.msra.mxu0 %v411
    %456 = vmatmul.f32.gmra.mxu0 %v435
    %v457 = vpop.f32.mrf.mxu0
    %v458 = vadd.f32 %v426, %v457
    %459 = vmatmul.f32.gmra.mxu0 %v438
    %v460 = vpop.f32.mrf.mxu0
    %v461 = vadd.f32 %v431, %v460
    %462 = vdwg.mxu0
    %v463 = vmax.f32 %v458, 0.0
    %v464 = vmax.f32 %v461, 0.0
    %v465 = vld [vmem:[%s9] sm:$0xff]
    %v466 = vld [vmem:[%s10] sm:$0xff]
    %468 = vset.pattern.permute.xlu0 0
    %469 = vperm.xlu0 %468, %v466
    %v470 = vpop.permute.xlu0 %469
    %vm472 = vcmask 130048
    %v474 = vsel %vm472, %v465, 0
    %476 = vmatpush.msra.mxu0 0.0
    %477 = vmatpush.msra.mxu0 0.0
    %478 = vmatpush.msra.mxu0 0.0
    %479 = vmatpush.msra.mxu0 0.0
    %480 = vmatpush.msra.mxu0 0.0
    %481 = vmatpush.msra.mxu0 0.0
    %482 = vmatpush.msra.mxu0 0.0
    %483 = vmatpush.msra.mxu0 0.0
    %484 = vmatpush.msra.mxu0 0.0
    %485 = vmatpush.msra.mxu0 0.0
    %486 = vmatpush.msra.mxu0 0.0
    %487 = vmatpush.msra.mxu0 0.0
    %488 = vmatpush.msra.mxu0 0.0
    %489 = vmatpush.msra.mxu0 0.0
    %490 = vmatpush.msra.mxu0 %v464
    %491 = vmatpush.msra.mxu0 %v463
    %492 = vmatmul.f32.gmra.mxu0 %v474
    %v493 = vpop.f32.mrf.mxu0
    %v494 = vadd.f32 %v470, %v493
    %495 = vdwg.mxu0
    %v496 = vmax.f32 %v494, 0.0
    %v497 = vld [vmem:[%s11] sm:$0xff]
    %499 = vset.pattern.permute.xlu0 0
    %500 = vperm.xlu0 %499, %v497
    %v501 = vpop.permute.xlu0 %500
    %v503 = vmul.f32 %v496, %v501
    %v504 = vrot.slane %v503, 4
    %v505 = vadd.f32 %v503, %v504
    %v506 = vrot.slane %v505, 2
    %v507 = vadd.f32 %v505, %v506
    %v508 = vrot.slane %v507, 1
    %v509 = vadd.f32 %v507, %v508
    %v510 = vld [vmem:[#allocation2] sm:$0x1]
    %512 = vset.pattern.permute.xlu0 0
    %513 = vperm.xlu0 %512, %v510
    %v514 = vpop.permute.xlu0 %513
    %v516 = vperm.slane %v514, 0
    %v517 = vadd.f32 %v509, %v516
    %518 = vst [vmem:[#allocation3] sm:$0x1] %v517
    // Predicated region
    $region54: #{tpu_custom_call.1} parent=1 // pred_check
      _
    $region55: #{tpu_custom_call.1} parent=1 // pred_check_branch
      %520 = sbr.rel (0) target = $region57
    $region56: #{tpu_custom_call.1} parent=1 // pred_region
      %522 = vsyncadd [#allocation4], 0
      %s524 = sshll.u32 [#allocation3], 4
      %s525 = int_to_ptr.vmem [resolvable:$true] %s524
      %s526 = sshll.u32 %s13, 4
      %s527 = int_to_ptr.hbm [resolvable:$true] %s526
      %529 = dma.vmem_to_hbm [thread:$0]  %s525, 16, %s527, [#allocation4]
    $region57: #{tpu_custom_call.1} parent=1 // pred_fallthru
      _
    // Predicated region
    $region58: #{tpu_custom_call.1} parent=1 // pred_check
      _
    $region59: #{tpu_custom_call.1} parent=1 // pred_check_branch
      %531 = sbr.rel (0) target = $region61
    $region60: #{tpu_custom_call.1} parent=1 // pred_region
      %533 = dma.done [#allocation4], 16
    $region61: #{tpu_custom_call.1} parent=1 // pred_fallthru
      _
    %534 = vsyncpa [#allocation4], 1

</llo_original>
